<compile_context>
chip_gen: v7x
topology: tpu7x:2x2x1
jax: 0.10.0
libtpu: 0.0.40
codegen_flags: <defaults>
</compile_context>

<pallas_src>
import functools

import jax
import jax.numpy as jnp
from jax.experimental import pallas as pl
from jax.experimental.pallas import tpu as pltpu


def _round_up(x, m):
    return (x + m - 1) // m * m


def _dense(x, w_ref, b_ref):
    """x @ w + b with f32 MXU accumulation.

    x is cast to the weight dtype at the matmul only, so bf16 weights hit the
    MXU's native bf16 path while bias add / ReLU / softmax stay f32."""
    w = w_ref[...]
    acc = jnp.dot(x.astype(w.dtype), w, preferred_element_type=jnp.float32)
    return acc + b_ref[...].astype(jnp.float32)


def _critic_kernel(x_ref, w1_ref, b1_ref, w2_ref, b2_ref, w3_ref, b3_ref,
                   wv_ref, bv_ref, out_ref, *, use_softmax):
    h = jnp.maximum(_dense(x_ref[...], w1_ref, b1_ref), 0.0)   # fc1 + relu
    h = jnp.maximum(_dense(h, w2_ref, b2_ref), 0.0)            # fc2 + relu
    h = jnp.maximum(_dense(h, w3_ref, b3_ref), 0.0)            # fc3 + relu
    v = _dense(h, wv_ref, bv_ref)                              # value head
    if use_softmax:
        # softmax over the feature axis (PyTorch dim=1); no padded lanes here.
        m = jnp.max(v, axis=-1, keepdims=True)
        e = jnp.exp(v - m)
        denom = jnp.sum(e, axis=-1, keepdims=True)
        v = e * pl.reciprocal(denom, approx=True)
    out_ref[...] = v.astype(out_ref.dtype)


def critic_forward(x, params, *, use_softmax=False,
                   weight_dtype=jnp.bfloat16, block_m=1024):
    """Critic forward pass as a single Pallas kernel.

    x: [B, input_dim] float32
    params: dict with w1,b1,w2,b2,w3,b3,wv,bv (weights already [in, out]).
    weight_dtype: jnp.bfloat16 (default; native MXU path, halved weight/x HBM
        traffic) or jnp.float32 (bit-accurate).
    """
    B, in_dim = x.shape
    fc1 = params["w1"].shape[1]
    fc2 = params["w2"].shape[1]
    fc3 = params["w3"].shape[1]
    out_dim = params["wv"].shape[1]

    # --- batch tiling -------------------------------------------------------
    # Minimize padding (8-sublane granule) and, once B is large enough to be
    # worth it, split into >= 2 grid steps so the "parallel" grid axis can be
    # sharded across v7x's 2 TensorCores.
    steps = pl.cdiv(B, block_m)
    if B >= 256:
        steps = max(steps, 2)
    bm = _round_up(pl.cdiv(B, steps), 8)
    b_pad = _round_up(B, bm)

    # Pre-cast x to the matmul input dtype in the wrapper: removes the
    # per-step VPU cast of the x tile and halves the x HBM read when bf16.
    x_p = x.astype(weight_dtype)
    if b_pad != B:
        x_p = jnp.pad(x_p, ((0, b_pad - B), (0, 0)))

    def wcast(w):
        return w.astype(weight_dtype)

    operands = (
        x_p,
        wcast(params["w1"]), params["b1"],
        wcast(params["w2"]), params["b2"],
        wcast(params["w3"]), params["b3"],
        wcast(params["wv"]), params["bv"],
    )

    # Weights/biases: whole array, constant block index -> VMEM-resident
    # across the batch grid (DMA'd once).
    def resident_spec(a):
        zeros = (0,) * a.ndim
        return pl.BlockSpec(a.shape, lambda i, _z=zeros: _z)

    in_specs = [pl.BlockSpec((bm, in_dim), lambda i: (i, 0))]
    in_specs += [resident_spec(a) for a in operands[1:]]

    # --- VMEM budget: ask for what we need (plus headroom), not all of it ---
    resident_bytes = sum(int(a.size) * a.dtype.itemsize for a in operands[1:])
    w_itemsize = jnp.dtype(weight_dtype).itemsize
    tile_bytes = bm * in_dim * w_itemsize + bm * out_dim * 4
    act_bytes = bm * (fc1 + fc2 + fc3) * (4 + w_itemsize)
    need = 2 * (resident_bytes + tile_bytes) + act_bytes   # double-buffered I/O
    vmem_limit = int(min(32 * 1024 * 1024, max(8 * 1024 * 1024, 2 * need)))

    kernel = functools.partial(_critic_kernel, use_softmax=use_softmax)

    out = pl.pallas_call(
        kernel,
        out_shape=jax.ShapeDtypeStruct((b_pad, out_dim), jnp.float32),
        grid=(b_pad // bm,),
        in_specs=in_specs,
        # Output block covers the full (small) feature dim: writeback is only
        # the real data and the HBM write of each tile is contiguous.
        out_specs=pl.BlockSpec((bm, out_dim), lambda i: (i, 0)),
        compiler_params=pltpu.CompilerParams(
            dimension_semantics=("parallel",),
            vmem_limit_bytes=vmem_limit,
        ),
    )(*operands)

    return out[:B] if b_pad != B else out


def make_critic_params(key, input_dim, output_dim,
                       fc1_size=256, fc2_size=256, fc3_size=256):
    """Mirror orthogonal_init: orthogonal weights (gain=1), zero biases.
    Weights are stored transposed as [in, out] for the kernel matmuls."""
    ortho = jax.nn.initializers.orthogonal()
    k1, k2, k3, k4 = jax.random.split(key, 4)
    # PyTorch Linear weight is [out, in]; init in that shape, then transpose.
    w1 = ortho(k1, (fc1_size, input_dim), jnp.float32).T
    w2 = ortho(k2, (fc2_size, fc1_size), jnp.float32).T
    w3 = ortho(k3, (fc3_size, fc2_size), jnp.float32).T
    wv = ortho(k4, (output_dim, fc3_size), jnp.float32).T
    return {
        "w1": w1, "b1": jnp.zeros((1, fc1_size), jnp.float32),
        "w2": w2, "b2": jnp.zeros((1, fc2_size), jnp.float32),
        "w3": w3, "b3": jnp.zeros((1, fc3_size), jnp.float32),
        "wv": wv, "bv": jnp.zeros((1, output_dim), jnp.float32),
    }


def critic_reference(x, params, *, use_softmax=False):
    hp = jax.lax.Precision.HIGHEST

    def dense(a, w, b):
        return jnp.dot(a, w, precision=hp) + b

    h = jax.nn.relu(dense(x, params["w1"], params["b1"]))
    h = jax.nn.relu(dense(h, params["w2"], params["b2"]))
    h = jax.nn.relu(dense(h, params["w3"], params["b3"]))
    v = dense(h, params["wv"], params["bv"])
    if use_softmax:
        v = jax.nn.softmax(v, axis=1)
    return v


# TODO(synk): Critic.get_action (argmax -> Python int) is a host-side helper,
# not part of the forward pass; it is intentionally not implemented in-kernel.


if __name__ == "__main__":
    key = jax.random.PRNGKey(0)
    k_x, k_xl, k_p = jax.random.split(key, 3)

    batch, input_dim, output_dim = 8, 32, 8
    x = jax.random.normal(k_x, (batch, input_dim), jnp.float32)
    params = make_critic_params(k_p, input_dim, output_dim)

    ref = critic_reference(x, params, use_softmax=False)
    ref_sm = critic_reference(x, params, use_softmax=True)

    # 1) f32 weights, no softmax — tight tolerance.
    out = jax.block_until_ready(
        critic_forward(x, params, use_softmax=False, weight_dtype=jnp.float32))
    assert out.shape == ref.shape, "shape mismatch"
    assert jnp.allclose(out, ref, atol=1e-4, rtol=1e-4), "value mismatch"

    # 2) f32 weights, softmax — approx EUP reciprocal, slightly looser.
    out_sm = jax.block_until_ready(
        critic_forward(x, params, use_softmax=True, weight_dtype=jnp.float32))
    assert jnp.allclose(out_sm, ref_sm, atol=5e-3, rtol=5e-3), "softmax mismatch"

    # 3) Default path (bf16 matmul inputs), awkward batch size (300) that now
    #    runs as 2 parallel grid steps of 152 rows (minimal padding).
    xl = jax.random.normal(k_xl, (300, input_dim), jnp.float32)
    ref_l = critic_reference(xl, params, use_softmax=False)
    out_l = jax.block_until_ready(critic_forward(xl, params, use_softmax=False))
    assert out_l.shape == (300, output_dim), "tiled shape mismatch"
    assert jnp.allclose(out_l, ref_l, atol=1e-1, rtol=1e-1), "bf16 value mismatch"

    print("KERNEL_OK")
</pallas_src>

<mosaic_0001>
module attributes {stable_mosaic.version = 11 : i64} {
  func.func @_critic_kernel(%arg0: i32, %arg1: memref<8x32xf32, #tpu.memory_space<vmem>>, %arg2: memref<32x256xf32, #tpu.memory_space<vmem>>, %arg3: memref<1x256xf32, #tpu.memory_space<vmem>>, %arg4: memref<256x256xf32, #tpu.memory_space<vmem>>, %arg5: memref<1x256xf32, #tpu.memory_space<vmem>>, %arg6: memref<256x256xf32, #tpu.memory_space<vmem>>, %arg7: memref<1x256xf32, #tpu.memory_space<vmem>>, %arg8: memref<256x8xf32, #tpu.memory_space<vmem>>, %arg9: memref<1x8xf32, #tpu.memory_space<vmem>>, %arg10: memref<8x8xf32, #tpu.memory_space<vmem>>) attributes {dimension_semantics = [#tpu.dimension_semantics<parallel>], iteration_bounds = array<i64: 1>, scalar_prefetch = 0 : i64, scratch_operands = 0 : i64, tpu.core_type = #tpu.core_type<tc>, window_params = [{transform_indices = @transform_0, window_bounds = array<i64: 8, 32>}, {pipeline_mode = #tpu.pipeline_mode<synchronous>, transform_indices = @transform_1, window_bounds = array<i64: 32, 256>}, {pipeline_mode = #tpu.pipeline_mode<synchronous>, transform_indices = @transform_2, window_bounds = array<i64: 1, 256>}, {pipeline_mode = #tpu.pipeline_mode<synchronous>, transform_indices = @transform_3, window_bounds = array<i64: 256, 256>}, {pipeline_mode = #tpu.pipeline_mode<synchronous>, transform_indices = @transform_4, window_bounds = array<i64: 1, 256>}, {pipeline_mode = #tpu.pipeline_mode<synchronous>, transform_indices = @transform_5, window_bounds = array<i64: 256, 256>}, {pipeline_mode = #tpu.pipeline_mode<synchronous>, transform_indices = @transform_6, window_bounds = array<i64: 1, 256>}, {pipeline_mode = #tpu.pipeline_mode<synchronous>, transform_indices = @transform_7, window_bounds = array<i64: 256, 8>}, {pipeline_mode = #tpu.pipeline_mode<synchronous>, transform_indices = @transform_8, window_bounds = array<i64: 1, 8>}, {transform_indices = @transform_9, window_bounds = array<i64: 8, 8>}]} {
    %c0 = arith.constant 0 : index
    %c0_0 = arith.constant 0 : index
    %0 = vector.load %arg1[%c0, %c0_0] : memref<8x32xf32, #tpu.memory_space<vmem>>, vector<8x32xf32>
    %c0_1 = arith.constant 0 : index
    %c0_2 = arith.constant 0 : index
    %1 = vector.load %arg2[%c0_1, %c0_2] : memref<32x256xf32, #tpu.memory_space<vmem>>, vector<32x256xf32>
    %cst = arith.constant dense<0.000000e+00> : vector<8x256xf32>
    %2 = tpu.matmul %0, %1, %cst {dimension_numbers = #tpu.dot_dimension_numbers<[1], [0], [0], [1], [0, 0, 1, 1], [], []>} : vector<8x32xf32>, vector<32x256xf32>, vector<8x256xf32> -> vector<8x256xf32>
    %c0_3 = arith.constant 0 : index
    %c0_4 = arith.constant 0 : index
    %3 = vector.load %arg3[%c0_3, %c0_4] : memref<1x256xf32, #tpu.memory_space<vmem>>, vector<1x256xf32>
    %4 = vector.broadcast %3 : vector<1x256xf32> to vector<8x256xf32>
    %5 = arith.addf %2, %4 : vector<8x256xf32>
    %cst_5 = arith.constant 0.000000e+00 : f32
    %6 = vector.broadcast %cst_5 : f32 to vector<8x256xf32>
    %7 = arith.maximumf %5, %6 : vector<8x256xf32>
    %c0_6 = arith.constant 0 : index
    %c0_7 = arith.constant 0 : index
    %8 = vector.load %arg4[%c0_6, %c0_7] : memref<256x256xf32, #tpu.memory_space<vmem>>, vector<256x256xf32>
    %cst_8 = arith.constant dense<0.000000e+00> : vector<8x256xf32>
    %9 = tpu.matmul %7, %8, %cst_8 {dimension_numbers = #tpu.dot_dimension_numbers<[1], [0], [0], [1], [0, 0, 1, 1], [], []>} : vector<8x256xf32>, vector<256x256xf32>, vector<8x256xf32> -> vector<8x256xf32>
    %c0_9 = arith.constant 0 : index
    %c0_10 = arith.constant 0 : index
    %10 = vector.load %arg5[%c0_9, %c0_10] : memref<1x256xf32, #tpu.memory_space<vmem>>, vector<1x256xf32>
    %11 = vector.broadcast %10 : vector<1x256xf32> to vector<8x256xf32>
    %12 = arith.addf %9, %11 : vector<8x256xf32>
    %cst_11 = arith.constant 0.000000e+00 : f32
    %13 = vector.broadcast %cst_11 : f32 to vector<8x256xf32>
    %14 = arith.maximumf %12, %13 : vector<8x256xf32>
    %c0_12 = arith.constant 0 : index
    %c0_13 = arith.constant 0 : index
    %15 = vector.load %arg6[%c0_12, %c0_13] : memref<256x256xf32, #tpu.memory_space<vmem>>, vector<256x256xf32>
    %cst_14 = arith.constant dense<0.000000e+00> : vector<8x256xf32>
    %16 = tpu.matmul %14, %15, %cst_14 {dimension_numbers = #tpu.dot_dimension_numbers<[1], [0], [0], [1], [0, 0, 1, 1], [], []>} : vector<8x256xf32>, vector<256x256xf32>, vector<8x256xf32> -> vector<8x256xf32>
    %c0_15 = arith.constant 0 : index
    %c0_16 = arith.constant 0 : index
    %17 = vector.load %arg7[%c0_15, %c0_16] : memref<1x256xf32, #tpu.memory_space<vmem>>, vector<1x256xf32>
    %18 = vector.broadcast %17 : vector<1x256xf32> to vector<8x256xf32>
    %19 = arith.addf %16, %18 : vector<8x256xf32>
    %cst_17 = arith.constant 0.000000e+00 : f32
    %20 = vector.broadcast %cst_17 : f32 to vector<8x256xf32>
    %21 = arith.maximumf %19, %20 : vector<8x256xf32>
    %c0_18 = arith.constant 0 : index
    %c0_19 = arith.constant 0 : index
    %22 = vector.load %arg8[%c0_18, %c0_19] : memref<256x8xf32, #tpu.memory_space<vmem>>, vector<256x8xf32>
    %cst_20 = arith.constant dense<0.000000e+00> : vector<8x8xf32>
    %23 = tpu.matmul %21, %22, %cst_20 {dimension_numbers = #tpu.dot_dimension_numbers<[1], [0], [0], [1], [0, 0, 1, 1], [], []>} : vector<8x256xf32>, vector<256x8xf32>, vector<8x8xf32> -> vector<8x8xf32>
    %c0_21 = arith.constant 0 : index
    %c0_22 = arith.constant 0 : index
    %24 = vector.load %arg9[%c0_21, %c0_22] : memref<1x8xf32, #tpu.memory_space<vmem>>, vector<1x8xf32>
    %25 = vector.broadcast %24 : vector<1x8xf32> to vector<8x8xf32>
    %26 = arith.addf %23, %25 : vector<8x8xf32>
    %c0_23 = arith.constant 0 : index
    %c0_24 = arith.constant 0 : index
    %27 = vector.load %arg10[%c0_23, %c0_24] : memref<8x8xf32, #tpu.memory_space<vmem>>, vector<8x8xf32>
    tpu.vector_store %arg10[%c0_23, %c0_24], %26 {strides = array<i32>} : memref<8x8xf32, #tpu.memory_space<vmem>>, vector<8x8xf32>,
    return
  }
  func.func @transform_0(%arg0: i32) -> (i32, i32) {
    %c0_i32 = arith.constant 0 : i32
    %c0_i32_0 = arith.constant 0 : i32
    return %arg0, %c0_i32 : i32, i32
  }
  func.func @transform_1(%arg0: i32) -> (i32, i32) {
    %c0_i32 = arith.constant 0 : i32
    %c0_i32_0 = arith.constant 0 : i32
    %c0_i32_1 = arith.constant 0 : i32
    return %c0_i32, %c0_i32_0 : i32, i32
  }
  func.func @transform_2(%arg0: i32) -> (i32, i32) {
    %c0_i32 = arith.constant 0 : i32
    %c0_i32_0 = arith.constant 0 : i32
    %c0_i32_1 = arith.constant 0 : i32
    return %c0_i32, %c0_i32_0 : i32, i32
  }
  func.func @transform_3(%arg0: i32) -> (i32, i32) {
    %c0_i32 = arith.constant 0 : i32
    %c0_i32_0 = arith.constant 0 : i32
    %c0_i32_1 = arith.constant 0 : i32
    return %c0_i32, %c0_i32_0 : i32, i32
  }
  func.func @transform_4(%arg0: i32) -> (i32, i32) {
    %c0_i32 = arith.constant 0 : i32
    %c0_i32_0 = arith.constant 0 : i32
    %c0_i32_1 = arith.constant 0 : i32
    return %c0_i32, %c0_i32_0 : i32, i32
  }
  func.func @transform_5(%arg0: i32) -> (i32, i32) {
    %c0_i32 = arith.constant 0 : i32
    %c0_i32_0 = arith.constant 0 : i32
    %c0_i32_1 = arith.constant 0 : i32
    return %c0_i32, %c0_i32_0 : i32, i32
  }
  func.func @transform_6(%arg0: i32) -> (i32, i32) {
    %c0_i32 = arith.constant 0 : i32
    %c0_i32_0 = arith.constant 0 : i32
    %c0_i32_1 = arith.constant 0 : i32
    return %c0_i32, %c0_i32_0 : i32, i32
  }
  func.func @transform_7(%arg0: i32) -> (i32, i32) {
    %c0_i32 = arith.constant 0 : i32
    %c0_i32_0 = arith.constant 0 : i32
    %c0_i32_1 = arith.constant 0 : i32
    return %c0_i32, %c0_i32_0 : i32, i32
  }
  func.func @transform_8(%arg0: i32) -> (i32, i32) {
    %c0_i32 = arith.constant 0 : i32
    %c0_i32_0 = arith.constant 0 : i32
    %c0_i32_1 = arith.constant 0 : i32
    return %c0_i32, %c0_i32_0 : i32, i32
  }
  func.func @transform_9(%arg0: i32) -> (i32, i32) {
    %c0_i32 = arith.constant 0 : i32
    %c0_i32_0 = arith.constant 0 : i32
    return %arg0, %c0_i32 : i32, i32
  }
}

</mosaic_0001>

<llo_original>
// kernel: tpu_custom_call.1
$region0: #{tpu_custom_call.1}
  #allocation0 [shape = 'u32[]', space=smem, size = 0x4, offset = 0x4, fixed_abs, tag = 'smem constant byte address 0x4 - core index']
  #allocation1 [shape = 'u32[144,128]{1,0:T(1,128)}', space=vmem, size = 0x12000, scoped, tag = 'internal scratch']
  %s0 = inlined_call_operand.vmem [shape: f32[8,32], index: 0, kind: input, shape index: {}]
  %s1 = inlined_call_operand.vmem [shape: f32[32,256], index: 1, kind: input, shape index: {}]
  %s2 = inlined_call_operand.vmem [shape: f32[1,256], index: 2, kind: input, shape index: {}]
  %s3 = inlined_call_operand.hbm [shape: f32[256,256], index: 3, kind: input, shape index: {}]
  %s4 = inlined_call_operand.vmem [shape: f32[1,256], index: 4, kind: input, shape index: {}]
  %s5 = inlined_call_operand.hbm [shape: f32[256,256], index: 5, kind: input, shape index: {}]
  %s6 = inlined_call_operand.vmem [shape: f32[1,256], index: 6, kind: input, shape index: {}]
  %s7 = inlined_call_operand.vmem [shape: f32[256,8], index: 7, kind: input, shape index: {}]
  %s8 = inlined_call_operand.vmem [shape: f32[1,8], index: 8, kind: input, shape index: {}]
  %s9 = inlined_call_operand.hbm [shape: f32[8,8], index: 9, kind: output, shape index: {}]
  %s10 = sld [smem:[#allocation0]]
  $region54: #{tpu_custom_call.1} parent=0
    _
  %s12 = ssub.s32 1, %s10
  %s13 = scalar_select 0, %s12, %s10
  $region1: #{tpu_custom_call.1} parent=0
    #allocation2 [shape = 'u8[262144]{0}', space=vmem, size = 0x40000, scoped, tag = 'input window, operand 3, single buffered']
    #allocation3 [shape = 's32[1]{0}', space=sflag, size = 0x4, scoped, tag = 'scoped memory for tpu_custom_call.1']
    #allocation4 [shape = 's32[1]{0}', space=sflag, size = 0x4, scoped, tag = 'scoped memory for tpu_custom_call.1']
    #allocation5 [shape = 'u8[262144]{0}', space=vmem, size = 0x40000, scoped, tag = 'input window, operand 5, single buffered']
    #allocation6 [shape = 's32[1]{0}', space=sflag, size = 0x4, scoped, tag = 'scoped memory for tpu_custom_call.1']
    #allocation7 [shape = 'u8[4096]{0}', space=vmem, size = 0x1000, scoped, tag = 'output window, operand 0, single buffered']
    %14 = vsyncpa [#allocation3], 0
    %15 = vsyncpa [#allocation6], 0
    %16 = vsyncpa [#allocation4], 0
    // Predicated region
    $region2: #{tpu_custom_call.1} parent=1 // pred_check
      _
    $region3: #{tpu_custom_call.1} parent=1 // pred_check_branch
      %18 = sbr.rel (0) target = $region5
    $region4: #{tpu_custom_call.1} parent=1 // pred_region
      _
    $region5: #{tpu_custom_call.1} parent=1 // pred_fallthru
      _
    // Predicated region
    $region6: #{tpu_custom_call.1} parent=1 // pred_check
      _
    $region7: #{tpu_custom_call.1} parent=1 // pred_check_branch
      %20 = sbr.rel (0) target = $region9
    $region8: #{tpu_custom_call.1} parent=1 // pred_region
      _
    $region9: #{tpu_custom_call.1} parent=1 // pred_fallthru
      _
    // Predicated region
    $region10: #{tpu_custom_call.1} parent=1 // pred_check
      _
    $region11: #{tpu_custom_call.1} parent=1 // pred_check_branch
      %22 = sbr.rel (0) target = $region13
    $region12: #{tpu_custom_call.1} parent=1 // pred_region
      _
    $region13: #{tpu_custom_call.1} parent=1 // pred_fallthru
      _
    // Predicated region
    $region14: #{tpu_custom_call.1} parent=1 // pred_check
      _
    $region15: #{tpu_custom_call.1} parent=1 // pred_check_branch
      %24 = sbr.rel (0) target = $region17
    $region16: #{tpu_custom_call.1} parent=1 // pred_region
      %s26 = ssub.s32 8192, 8192
      %27 = vsyncadd [#allocation3], %s26
      %s28 = sshll.u32 [#allocation2], 4
      %s29 = int_to_ptr.vmem [resolvable:$true] %s28
      %34 = dma.hbm_to_vmem [thread:$0]  %s3, 8192, %s29, [#allocation3], 256, 256, 16
    $region17: #{tpu_custom_call.1} parent=1 // pred_fallthru
      _
    // Predicated region
    $region18: #{tpu_custom_call.1} parent=1 // pred_check
      _
    $region19: #{tpu_custom_call.1} parent=1 // pred_check_branch
      %36 = sbr.rel (0) target = $region21
    $region20: #{tpu_custom_call.1} parent=1 // pred_region
      _
    $region21: #{tpu_custom_call.1} parent=1 // pred_fallthru
      _
    // Predicated region
    $region22: #{tpu_custom_call.1} parent=1 // pred_check
      _
    $region23: #{tpu_custom_call.1} parent=1 // pred_check_branch
      %38 = sbr.rel (0) target = $region25
    $region24: #{tpu_custom_call.1} parent=1 // pred_region
      %s40 = ssub.s32 8192, 8192
      %41 = vsyncadd [#allocation6], %s40
      %s42 = sshll.u32 [#allocation5], 4
      %s43 = int_to_ptr.vmem [resolvable:$true] %s42
      %48 = dma.hbm_to_vmem [thread:$0]  %s5, 8192, %s43, [#allocation6], 256, 256, 16
    $region25: #{tpu_custom_call.1} parent=1 // pred_fallthru
      _
    // Predicated region
    $region26: #{tpu_custom_call.1} parent=1 // pred_check
      _
    $region27: #{tpu_custom_call.1} parent=1 // pred_check_branch
      %50 = sbr.rel (0) target = $region29
    $region28: #{tpu_custom_call.1} parent=1 // pred_region
      _
    $region29: #{tpu_custom_call.1} parent=1 // pred_fallthru
      _
    // Predicated region
    $region30: #{tpu_custom_call.1} parent=1 // pred_check
      _
    $region31: #{tpu_custom_call.1} parent=1 // pred_check_branch
      %52 = sbr.rel (0) target = $region33
    $region32: #{tpu_custom_call.1} parent=1 // pred_region
      _
    $region33: #{tpu_custom_call.1} parent=1 // pred_fallthru
      _
    // Predicated region
    $region34: #{tpu_custom_call.1} parent=1 // pred_check
      _
    $region35: #{tpu_custom_call.1} parent=1 // pred_check_branch
      %54 = sbr.rel (0) target = $region37
    $region36: #{tpu_custom_call.1} parent=1 // pred_region
      _
    $region37: #{tpu_custom_call.1} parent=1 // pred_fallthru
      _
    // Predicated region
    $region38: #{tpu_custom_call.1} parent=1 // pred_check
      _
    $region39: #{tpu_custom_call.1} parent=1 // pred_check_branch
      %56 = sbr.rel (0) target = $region41
    $region40: #{tpu_custom_call.1} parent=1 // pred_region
      %57 = dma.done [#allocation3], 8192
    $region41: #{tpu_custom_call.1} parent=1 // pred_fallthru
      _
    // Predicated region
    $region42: #{tpu_custom_call.1} parent=1 // pred_check
      _
    $region43: #{tpu_custom_call.1} parent=1 // pred_check_branch
      %59 = sbr.rel (0) target = $region45
    $region44: #{tpu_custom_call.1} parent=1 // pred_region
      %60 = dma.done [#allocation6], 8192
    $region45: #{tpu_custom_call.1} parent=1 // pred_fallthru
      _
    %v61 = vld [vmem:[%s0] sm:$0xff]
    %v62 = vld [vmem:[%s1] sm:$0xff]
    %v63 = vld [vmem:[%s1 + $0x8] sm:$0xff]
    %v64 = vld [vmem:[%s1 + $0x10] sm:$0xff]
    %v65 = vld [vmem:[%s1 + $0x18] sm:$0xff]
    %v66 = vld [vmem:[%s1 + $0x20] sm:$0xff]
    %v67 = vld [vmem:[%s1 + $0x28] sm:$0xff]
    %v68 = vld [vmem:[%s1 + $0x30] sm:$0xff]
    %v69 = vld [vmem:[%s1 + $0x38] sm:$0xff]
    %v70 = vld [vmem:[%s2] sm:$0x3]
    %v72 = vlaneseq
    %v73 = vshrl.u32 %v72, 7
    %v74 = vsub.s32 0, %v73
    %v75 = vrot.slane %v70, %v74
    %v76 = vlaneseq
    %v77 = vshrl.u32 %v76, 7
    %v78 = vsub.s32 1, %v77
    %v79 = vrot.slane %v70, %v78
    %vm82 = vcmask 261120
    %v84 = vsel %vm82, %v61, 0
    %86 = vmatprep.subr.mxu0 %v63
    %87 = vmatpush1.msra.mxu0 %v62
    %88 = vmatprep.subr.mxu0 %v65
    %89 = vmatpush1.msra.mxu0 %v64
    %90 = vmatprep.subr.mxu0 %v67
    %91 = vmatpush1.msra.mxu0 %v66
    %92 = vmatprep.subr.mxu0 %v69
    %93 = vmatpush1.msra.mxu0 %v68
    %94 = vmatprep.subr.mxu0 0.0
    %95 = vmatpush1.msra.mxu0 0.0
    %96 = vmatprep.subr.mxu0 0.0
    %97 = vmatpush1.msra.mxu0 0.0
    %98 = vmatprep.subr.mxu0 0.0
    %99 = vmatpush1.msra.mxu0 0.0
    %100 = vmatprep.subr.mxu0 0.0
    %101 = vmatpush1.msra.mxu0 0.0
    %102 = vmatprep.subr.mxu0 0.0
    %103 = vmatpush1.msra.mxu0 0.0
    %104 = vmatprep.subr.mxu0 0.0
    %105 = vmatpush1.msra.mxu0 0.0
    %106 = vmatprep.subr.mxu0 0.0
    %107 = vmatpush1.msra.mxu0 0.0
    %108 = vmatprep.subr.mxu0 0.0
    %109 = vmatpush1.msra.mxu0 0.0
    %110 = vmatprep.subr.mxu0 0.0
    %111 = vmatpush1.msra.mxu0 0.0
    %112 = vmatprep.subr.mxu0 0.0
    %113 = vmatpush1.msra.mxu0 0.0
    %114 = vmatprep.subr.mxu0 0.0
    %115 = vmatpush1.msra.mxu0 0.0
    %116 = vmatprep.subr.mxu0 0.0
    %117 = vmatpush1.msra.mxu0 0.0
    %118 = vmatprep.subr.mxu0 0.0
    %119 = vmatpush1.msra.mxu0 0.0
    %120 = vmatprep.subr.mxu0 0.0
    %121 = vmatpush1.msra.mxu0 0.0
    %122 = vmatprep.subr.mxu0 0.0
    %123 = vmatpush1.msra.mxu0 0.0
    %124 = vmatprep.subr.mxu0 0.0
    %125 = vmatpush1.msra.mxu0 0.0
    %126 = vmatprep.subr.mxu0 0.0
    %127 = vmatpush1.msra.mxu0 0.0
    %128 = vmatprep.subr.mxu0 0.0
    %129 = vmatpush1.msra.mxu0 0.0
    %130 = vmatprep.subr.mxu0 0.0
    %131 = vmatpush1.msra.mxu0 0.0
    %132 = vmatprep.subr.mxu0 0.0
    %133 = vmatpush1.msra.mxu0 0.0
    %134 = vmatprep.subr.mxu0 0.0
    %135 = vmatpush1.msra.mxu0 0.0
    %136 = vmatprep.subr.mxu0 0.0
    %137 = vmatpush1.msra.mxu0 0.0
    %138 = vmatprep.subr.mxu0 0.0
    %139 = vmatpush1.msra.mxu0 0.0
    %140 = vmatprep.subr.mxu0 0.0
    %141 = vmatpush1.msra.mxu0 0.0
    %142 = vmatprep.subr.mxu0 0.0
    %143 = vmatpush1.msra.mxu0 0.0
    %144 = vmatprep.subr.mxu0 0.0
    %145 = vmatpush1.msra.mxu0 0.0
    %146 = vmatprep.subr.mxu0 0.0
    %147 = vmatpush1.msra.mxu0 0.0
    %148 = vmatprep.subr.mxu0 0.0
    %149 = vmatpush1.msra.mxu0 0.0
    %150 = vmatprep.mubr.f32.mxu0 0.0
    %151 = vmatmul.mubr.f32.gmra.mrb[0].mxu0 %v84
    %v152 = vpop.f32.mrb[0].mxu0
    %v153 = vadd.f32 %v75, %v152
    %v154 = vpop.f32.mrb[0].mxu0
    %v155 = vadd.f32 %v79, %v154
    %156 = vdwg.mxu0
    %v157 = vmax.f32 %v153, 0.0
    %v158 = vmax.f32 %v155, 0.0
    %v159 = vld [vmem:[#allocation2] sm:$0xff]
    %v160 = vld [vmem:[#allocation2 + $0x8] sm:$0xff]
    %v161 = vld [vmem:[#allocation2 + $0x10] sm:$0xff]
    %v162 = vld [vmem:[#allocation2 + $0x18] sm:$0xff]
    %v163 = vld [vmem:[#allocation2 + $0x20] sm:$0xff]
    %v164 = vld [vmem:[#allocation2 + $0x28] sm:$0xff]
    %v165 = vld [vmem:[#allocation2 + $0x30] sm:$0xff]
    %v166 = vld [vmem:[#allocation2 + $0x38] sm:$0xff]
    %v167 = vld [vmem:[#allocation2 + $0x40] sm:$0xff]
    %v168 = vld [vmem:[#allocation2 + $0x48] sm:$0xff]
    %v169 = vld [vmem:[#allocation2 + $0x50] sm:$0xff]
    %v170 = vld [vmem:[#allocation2 + $0x58] sm:$0xff]
    %v171 = vld [vmem:[#allocation2 + $0x60] sm:$0xff]
    %v172 = vld [vmem:[#allocation2 + $0x68] sm:$0xff]
    %v173 = vld [vmem:[#allocation2 + $0x70] sm:$0xff]
    %v174 = vld [vmem:[#allocation2 + $0x78] sm:$0xff]
    %v175 = vld [vmem:[#allocation2 + $0x80] sm:$0xff]
    %v176 = vld [vmem:[#allocation2 + $0x88] sm:$0xff]
    %v177 = vld [vmem:[#allocation2 + $0x90] sm:$0xff]
    %v178 = vld [vmem:[#allocation2 + $0x98] sm:$0xff]
    %v179 = vld [vmem:[#allocation2 + $0xa0] sm:$0xff]
    %v180 = vld [vmem:[#allocation2 + $0xa8] sm:$0xff]
    %v181 = vld [vmem:[#allocation2 + $0xb0] sm:$0xff]
    %v182 = vld [vmem:[#allocation2 + $0xb8] sm:$0xff]
    %v183 = vld [vmem:[#allocation2 + $0xc0] sm:$0xff]
    %v184 = vld [vmem:[#allocation2 + $0xc8] sm:$0xff]
    %v185 = vld [vmem:[#allocation2 + $0xd0] sm:$0xff]
    %v186 = vld [vmem:[#allocation2 + $0xd8] sm:$0xff]
    %v187 = vld [vmem:[#allocation2 + $0xe0] sm:$0xff]
    %v188 = vld [vmem:[#allocation2 + $0xe8] sm:$0xff]
    %v189 = vld [vmem:[#allocation2 + $0xf0] sm:$0xff]
    %v190 = vld [vmem:[#allocation2 + $0xf8] sm:$0xff]
    %v191 = vld [vmem:[#allocation2 + $0x100] sm:$0xff]
    %v192 = vld [vmem:[#allocation2 + $0x108] sm:$0xff]
    %v193 = vld [vmem:[#allocation2 + $0x110] sm:$0xff]
    %v194 = vld [vmem:[#allocation2 + $0x118] sm:$0xff]
    %v195 = vld [vmem:[#allocation2 + $0x120] sm:$0xff]
    %v196 = vld [vmem:[#allocation2 + $0x128] sm:$0xff]
    %v197 = vld [vmem:[#allocation2 + $0x130] sm:$0xff]
    %v198 = vld [vmem:[#allocation2 + $0x138] sm:$0xff]
    %v199 = vld [vmem:[#allocation2 + $0x140] sm:$0xff]
    %v200 = vld [vmem:[#allocation2 + $0x148] sm:$0xff]
    %v201 = vld [vmem:[#allocation2 + $0x150] sm:$0xff]
    %v202 = vld [vmem:[#allocation2 + $0x158] sm:$0xff]
    %v203 = vld [vmem:[#allocation2 + $0x160] sm:$0xff]
    %v204 = vld [vmem:[#allocation2 + $0x168] sm:$0xff]
    %v205 = vld [vmem:[#allocation2 + $0x170] sm:$0xff]
    %v206 = vld [vmem:[#allocation2 + $0x178] sm:$0xff]
    %v207 = vld [vmem:[#allocation2 + $0x180] sm:$0xff]
    %v208 = vld [vmem:[#allocation2 + $0x188] sm:$0xff]
    %v209 = vld [vmem:[#allocation2 + $0x190] sm:$0xff]
    %v210 = vld [vmem:[#allocation2 + $0x198] sm:$0xff]
    %v211 = vld [vmem:[#allocation2 + $0x1a0] sm:$0xff]
    %v212 = vld [vmem:[#allocation2 + $0x1a8] sm:$0xff]
    %v213 = vld [vmem:[#allocation2 + $0x1b0] sm:$0xff]
    %v214 = vld [vmem:[#allocation2 + $0x1b8] sm:$0xff]
    %v215 = vld [vmem:[#allocation2 + $0x1c0] sm:$0xff]
    %v216 = vld [vmem:[#allocation2 + $0x1c8] sm:$0xff]
    %v217 = vld [vmem:[#allocation2 + $0x1d0] sm:$0xff]
    %v218 = vld [vmem:[#allocation2 + $0x1d8] sm:$0xff]
    %v219 = vld [vmem:[#allocation2 + $0x1e0] sm:$0xff]
    %v220 = vld [vmem:[#allocation2 + $0x1e8] sm:$0xff]
    %v221 = vld [vmem:[#allocation2 + $0x1f0] sm:$0xff]
    %v222 = vld [vmem:[#allocation2 + $0x1f8] sm:$0xff]
    %v223 = vld [vmem:[%s4] sm:$0x3]
    %v225 = vlaneseq
    %v226 = vshrl.u32 %v225, 7
    %v227 = vsub.s32 0, %v226
    %v228 = vrot.slane %v223, %v227
    %v229 = vlaneseq
    %v230 = vshrl.u32 %v229, 7
    %v231 = vsub.s32 1, %v230
    %v232 = vrot.slane %v223, %v231
    %235 = vmatprep.subr.mxu0 %v160
    %236 = vmatpush1.msra.mxu0 %v159
    %237 = vmatprep.subr.mxu0 %v162
    %238 = vmatpush1.msra.mxu0 %v161
    %239 = vmatprep.subr.mxu0 %v164
    %240 = vmatpush1.msra.mxu0 %v163
    %241 = vmatprep.subr.mxu0 %v166
    %242 = vmatpush1.msra.mxu0 %v165
    %243 = vmatprep.subr.mxu0 %v168
    %244 = vmatpush1.msra.mxu0 %v167
    %245 = vmatprep.subr.mxu0 %v170
    %246 = vmatpush1.msra.mxu0 %v169
    %247 = vmatprep.subr.mxu0 %v172
    %248 = vmatpush1.msra.mxu0 %v171
    %249 = vmatprep.subr.mxu0 %v174
    %250 = vmatpush1.msra.mxu0 %v173
    %251 = vmatprep.subr.mxu0 %v176
    %252 = vmatpush1.msra.mxu0 %v175
    %253 = vmatprep.subr.mxu0 %v178
    %254 = vmatpush1.msra.mxu0 %v177
    %255 = vmatprep.subr.mxu0 %v180
    %256 = vmatpush1.msra.mxu0 %v179
    %257 = vmatprep.subr.mxu0 %v182
    %258 = vmatpush1.msra.mxu0 %v181
    %259 = vmatprep.subr.mxu0 %v184
    %260 = vmatpush1.msra.mxu0 %v183
    %261 = vmatprep.subr.mxu0 %v186
    %262 = vmatpush1.msra.mxu0 %v185
    %263 = vmatprep.subr.mxu0 %v188
    %264 = vmatpush1.msra.mxu0 %v187
    %265 = vmatprep.subr.mxu0 %v190
    %266 = vmatpush1.msra.mxu0 %v189
    %267 = vmatprep.subr.mxu0 %v192
    %268 = vmatpush1.msra.mxu0 %v191
    %269 = vmatprep.subr.mxu0 %v194
    %270 = vmatpush1.msra.mxu0 %v193
    %271 = vmatprep.subr.mxu0 %v196
    %272 = vmatpush1.msra.mxu0 %v195
    %273 = vmatprep.subr.mxu0 %v198
    %274 = vmatpush1.msra.mxu0 %v197
    %275 = vmatprep.subr.mxu0 %v200
    %276 = vmatpush1.msra.mxu0 %v199
    %277 = vmatprep.subr.mxu0 %v202
    %278 = vmatpush1.msra.mxu0 %v201
    %279 = vmatprep.subr.mxu0 %v204
    %280 = vmatpush1.msra.mxu0 %v203
    %281 = vmatprep.subr.mxu0 %v206
    %282 = vmatpush1.msra.mxu0 %v205
    %283 = vmatprep.subr.mxu0 %v208
    %284 = vmatpush1.msra.mxu0 %v207
    %285 = vmatprep.subr.mxu0 %v210
    %286 = vmatpush1.msra.mxu0 %v209
    %287 = vmatprep.subr.mxu0 %v212
    %288 = vmatpush1.msra.mxu0 %v211
    %289 = vmatprep.subr.mxu0 %v214
    %290 = vmatpush1.msra.mxu0 %v213
    %291 = vmatprep.subr.mxu0 %v216
    %292 = vmatpush1.msra.mxu0 %v215
    %293 = vmatprep.subr.mxu0 %v218
    %294 = vmatpush1.msra.mxu0 %v217
    %295 = vmatprep.subr.mxu0 %v220
    %296 = vmatpush1.msra.mxu0 %v219
    %297 = vmatprep.subr.mxu0 %v222
    %298 = vmatpush1.msra.mxu0 %v221
    %299 = vmatprep.mubr.f32.mxu0 %v158
    %300 = vmatmul.mubr.f32.gmra.mrb[0].mxu0 %v157
    %v301 = vpop.f32.mrb[0].mxu0
    %v302 = vadd.f32 %v228, %v301
    %v303 = vpop.f32.mrb[0].mxu0
    %v304 = vadd.f32 %v232, %v303
    %305 = vdwg.mxu0
    %v306 = vmax.f32 %v302, 0.0
    %v307 = vmax.f32 %v304, 0.0
    %v308 = vld [vmem:[#allocation5] sm:$0xff]
    %v309 = vld [vmem:[#allocation5 + $0x8] sm:$0xff]
    %v310 = vld [vmem:[#allocation5 + $0x10] sm:$0xff]
    %v311 = vld [vmem:[#allocation5 + $0x18] sm:$0xff]
    %v312 = vld [vmem:[#allocation5 + $0x20] sm:$0xff]
    %v313 = vld [vmem:[#allocation5 + $0x28] sm:$0xff]
    %v314 = vld [vmem:[#allocation5 + $0x30] sm:$0xff]
    %v315 = vld [vmem:[#allocation5 + $0x38] sm:$0xff]
    %v316 = vld [vmem:[#allocation5 + $0x40] sm:$0xff]
    %v317 = vld [vmem:[#allocation5 + $0x48] sm:$0xff]
    %v318 = vld [vmem:[#allocation5 + $0x50] sm:$0xff]
    %v319 = vld [vmem:[#allocation5 + $0x58] sm:$0xff]
    %v320 = vld [vmem:[#allocation5 + $0x60] sm:$0xff]
    %v321 = vld [vmem:[#allocation5 + $0x68] sm:$0xff]
    %v322 = vld [vmem:[#allocation5 + $0x70] sm:$0xff]
    %v323 = vld [vmem:[#allocation5 + $0x78] sm:$0xff]
    %v324 = vld [vmem:[#allocation5 + $0x80] sm:$0xff]
    %v325 = vld [vmem:[#allocation5 + $0x88] sm:$0xff]
    %v326 = vld [vmem:[#allocation5 + $0x90] sm:$0xff]
    %v327 = vld [vmem:[#allocation5 + $0x98] sm:$0xff]
    %v328 = vld [vmem:[#allocation5 + $0xa0] sm:$0xff]
    %v329 = vld [vmem:[#allocation5 + $0xa8] sm:$0xff]
    %v330 = vld [vmem:[#allocation5 + $0xb0] sm:$0xff]
    %v331 = vld [vmem:[#allocation5 + $0xb8] sm:$0xff]
    %v332 = vld [vmem:[#allocation5 + $0xc0] sm:$0xff]
    %v333 = vld [vmem:[#allocation5 + $0xc8] sm:$0xff]
    %v334 = vld [vmem:[#allocation5 + $0xd0] sm:$0xff]
    %v335 = vld [vmem:[#allocation5 + $0xd8] sm:$0xff]
    %v336 = vld [vmem:[#allocation5 + $0xe0] sm:$0xff]
    %v337 = vld [vmem:[#allocation5 + $0xe8] sm:$0xff]
    %v338 = vld [vmem:[#allocation5 + $0xf0] sm:$0xff]
    %v339 = vld [vmem:[#allocation5 + $0xf8] sm:$0xff]
    %v340 = vld [vmem:[#allocation5 + $0x100] sm:$0xff]
    %v341 = vld [vmem:[#allocation5 + $0x108] sm:$0xff]
    %v342 = vld [vmem:[#allocation5 + $0x110] sm:$0xff]
    %v343 = vld [vmem:[#allocation5 + $0x118] sm:$0xff]
    %v344 = vld [vmem:[#allocation5 + $0x120] sm:$0xff]
    %v345 = vld [vmem:[#allocation5 + $0x128] sm:$0xff]
    %v346 = vld [vmem:[#allocation5 + $0x130] sm:$0xff]
    %v347 = vld [vmem:[#allocation5 + $0x138] sm:$0xff]
    %v348 = vld [vmem:[#allocation5 + $0x140] sm:$0xff]
    %v349 = vld [vmem:[#allocation5 + $0x148] sm:$0xff]
    %v350 = vld [vmem:[#allocation5 + $0x150] sm:$0xff]
    %v351 = vld [vmem:[#allocation5 + $0x158] sm:$0xff]
    %v352 = vld [vmem:[#allocation5 + $0x160] sm:$0xff]
    %v353 = vld [vmem:[#allocation5 + $0x168] sm:$0xff]
    %v354 = vld [vmem:[#allocation5 + $0x170] sm:$0xff]
    %v355 = vld [vmem:[#allocation5 + $0x178] sm:$0xff]
    %v356 = vld [vmem:[#allocation5 + $0x180] sm:$0xff]
    %v357 = vld [vmem:[#allocation5 + $0x188] sm:$0xff]
    %v358 = vld [vmem:[#allocation5 + $0x190] sm:$0xff]
    %v359 = vld [vmem:[#allocation5 + $0x198] sm:$0xff]
    %v360 = vld [vmem:[#allocation5 + $0x1a0] sm:$0xff]
    %v361 = vld [vmem:[#allocation5 + $0x1a8] sm:$0xff]
    %v362 = vld [vmem:[#allocation5 + $0x1b0] sm:$0xff]
    %v363 = vld [vmem:[#allocation5 + $0x1b8] sm:$0xff]
    %v364 = vld [vmem:[#allocation5 + $0x1c0] sm:$0xff]
    %v365 = vld [vmem:[#allocation5 + $0x1c8] sm:$0xff]
    %v366 = vld [vmem:[#allocation5 + $0x1d0] sm:$0xff]
    %v367 = vld [vmem:[#allocation5 + $0x1d8] sm:$0xff]
    %v368 = vld [vmem:[#allocation5 + $0x1e0] sm:$0xff]
    %v369 = vld [vmem:[#allocation5 + $0x1e8] sm:$0xff]
    %v370 = vld [vmem:[#allocation5 + $0x1f0] sm:$0xff]
    %v371 = vld [vmem:[#allocation5 + $0x1f8] sm:$0xff]
    %v372 = vld [vmem:[%s6] sm:$0x3]
    %v374 = vlaneseq
    %v375 = vshrl.u32 %v374, 7
    %v376 = vsub.s32 0, %v375
    %v377 = vrot.slane %v372, %v376
    %v378 = vlaneseq
    %v379 = vshrl.u32 %v378, 7
    %v380 = vsub.s32 1, %v379
    %v381 = vrot.slane %v372, %v380
    %384 = vmatprep.subr.mxu0 %v309
    %385 = vmatpush1.msra.mxu0 %v308
    %386 = vmatprep.subr.mxu0 %v311
    %387 = vmatpush1.msra.mxu0 %v310
    %388 = vmatprep.subr.mxu0 %v313
    %389 = vmatpush1.msra.mxu0 %v312
    %390 = vmatprep.subr.mxu0 %v315
    %391 = vmatpush1.msra.mxu0 %v314
    %392 = vmatprep.subr.mxu0 %v317
    %393 = vmatpush1.msra.mxu0 %v316
    %394 = vmatprep.subr.mxu0 %v319
    %395 = vmatpush1.msra.mxu0 %v318
    %396 = vmatprep.subr.mxu0 %v321
    %397 = vmatpush1.msra.mxu0 %v320
    %398 = vmatprep.subr.mxu0 %v323
    %399 = vmatpush1.msra.mxu0 %v322
    %400 = vmatprep.subr.mxu0 %v325
    %401 = vmatpush1.msra.mxu0 %v324
    %402 = vmatprep.subr.mxu0 %v327
    %403 = vmatpush1.msra.mxu0 %v326
    %404 = vmatprep.subr.mxu0 %v329
    %405 = vmatpush1.msra.mxu0 %v328
    %406 = vmatprep.subr.mxu0 %v331
    %407 = vmatpush1.msra.mxu0 %v330
    %408 = vmatprep.subr.mxu0 %v333
    %409 = vmatpush1.msra.mxu0 %v332
    %410 = vmatprep.subr.mxu0 %v335
    %411 = vmatpush1.msra.mxu0 %v334
    %412 = vmatprep.subr.mxu0 %v337
    %413 = vmatpush1.msra.mxu0 %v336
    %414 = vmatprep.subr.mxu0 %v339
    %415 = vmatpush1.msra.mxu0 %v338
    %416 = vmatprep.subr.mxu0 %v341
    %417 = vmatpush1.msra.mxu0 %v340
    %418 = vmatprep.subr.mxu0 %v343
    %419 = vmatpush1.msra.mxu0 %v342
    %420 = vmatprep.subr.mxu0 %v345
    %421 = vmatpush1.msra.mxu0 %v344
    %422 = vmatprep.subr.mxu0 %v347
    %423 = vmatpush1.msra.mxu0 %v346
    %424 = vmatprep.subr.mxu0 %v349
    %425 = vmatpush1.msra.mxu0 %v348
    %426 = vmatprep.subr.mxu0 %v351
    %427 = vmatpush1.msra.mxu0 %v350
    %428 = vmatprep.subr.mxu0 %v353
    %429 = vmatpush1.msra.mxu0 %v352
    %430 = vmatprep.subr.mxu0 %v355
    %431 = vmatpush1.msra.mxu0 %v354
    %432 = vmatprep.subr.mxu0 %v357
    %433 = vmatpush1.msra.mxu0 %v356
    %434 = vmatprep.subr.mxu0 %v359
    %435 = vmatpush1.msra.mxu0 %v358
    %436 = vmatprep.subr.mxu0 %v361
    %437 = vmatpush1.msra.mxu0 %v360
    %438 = vmatprep.subr.mxu0 %v363
    %439 = vmatpush1.msra.mxu0 %v362
    %440 = vmatprep.subr.mxu0 %v365
    %441 = vmatpush1.msra.mxu0 %v364
    %442 = vmatprep.subr.mxu0 %v367
    %443 = vmatpush1.msra.mxu0 %v366
    %444 = vmatprep.subr.mxu0 %v369
    %445 = vmatpush1.msra.mxu0 %v368
    %446 = vmatprep.subr.mxu0 %v371
    %447 = vmatpush1.msra.mxu0 %v370
    %448 = vmatprep.mubr.f32.mxu0 %v307
    %449 = vmatmul.mubr.f32.gmra.mrb[0].mxu0 %v306
    %v450 = vpop.f32.mrb[0].mxu0
    %v451 = vadd.f32 %v377, %v450
    %v452 = vpop.f32.mrb[0].mxu0
    %v453 = vadd.f32 %v381, %v452
    %454 = vdwg.mxu0
    %v455 = vmax.f32 %v451, 0.0
    %v456 = vmax.f32 %v453, 0.0
    %v457 = vld [vmem:[%s7] sm:$0xff]
    %v458 = vld [vmem:[%s7 + $0x8] sm:$0xff]
    %v459 = vld [vmem:[%s7 + $0x10] sm:$0xff]
    %v460 = vld [vmem:[%s7 + $0x18] sm:$0xff]
    %v461 = vld [vmem:[%s7 + $0x20] sm:$0xff]
    %v462 = vld [vmem:[%s7 + $0x28] sm:$0xff]
    %v463 = vld [vmem:[%s7 + $0x30] sm:$0xff]
    %v464 = vld [vmem:[%s7 + $0x38] sm:$0xff]
    %v465 = vld [vmem:[%s7 + $0x40] sm:$0xff]
    %v466 = vld [vmem:[%s7 + $0x48] sm:$0xff]
    %v467 = vld [vmem:[%s7 + $0x50] sm:$0xff]
    %v468 = vld [vmem:[%s7 + $0x58] sm:$0xff]
    %v469 = vld [vmem:[%s7 + $0x60] sm:$0xff]
    %v470 = vld [vmem:[%s7 + $0x68] sm:$0xff]
    %v471 = vld [vmem:[%s7 + $0x70] sm:$0xff]
    %v472 = vld [vmem:[%s7 + $0x78] sm:$0xff]
    %v473 = vld [vmem:[%s7 + $0x80] sm:$0xff]
    %v474 = vld [vmem:[%s7 + $0x88] sm:$0xff]
    %v475 = vld [vmem:[%s7 + $0x90] sm:$0xff]
    %v476 = vld [vmem:[%s7 + $0x98] sm:$0xff]
    %v477 = vld [vmem:[%s7 + $0xa0] sm:$0xff]
    %v478 = vld [vmem:[%s7 + $0xa8] sm:$0xff]
    %v479 = vld [vmem:[%s7 + $0xb0] sm:$0xff]
    %v480 = vld [vmem:[%s7 + $0xb8] sm:$0xff]
    %v481 = vld [vmem:[%s7 + $0xc0] sm:$0xff]
    %v482 = vld [vmem:[%s7 + $0xc8] sm:$0xff]
    %v483 = vld [vmem:[%s7 + $0xd0] sm:$0xff]
    %v484 = vld [vmem:[%s7 + $0xd8] sm:$0xff]
    %v485 = vld [vmem:[%s7 + $0xe0] sm:$0xff]
    %v486 = vld [vmem:[%s7 + $0xe8] sm:$0xff]
    %v487 = vld [vmem:[%s7 + $0xf0] sm:$0xff]
    %v488 = vld [vmem:[%s7 + $0xf8] sm:$0xff]
    %v489 = vld [vmem:[%s8] sm:$0x1]
    %v491 = vlaneseq
    %v492 = vshrl.u32 %v491, 7
    %v493 = vsub.s32 0, %v492
    %v494 = vrot.slane %v489, %v493
    %496 = vmatprep.subr.mxu0 0.0
    %497 = vmatpush1.msra.mxu0 %v457
    %498 = vmatprep.subr.mxu0 0.0
    %499 = vmatpush1.msra.mxu0 %v458
    %500 = vmatprep.subr.mxu0 0.0
    %501 = vmatpush1.msra.mxu0 %v459
    %502 = vmatprep.subr.mxu0 0.0
    %503 = vmatpush1.msra.mxu0 %v460
    %504 = vmatprep.subr.mxu0 0.0
    %505 = vmatpush1.msra.mxu0 %v461
    %506 = vmatprep.subr.mxu0 0.0
    %507 = vmatpush1.msra.mxu0 %v462
    %508 = vmatprep.subr.mxu0 0.0
    %509 = vmatpush1.msra.mxu0 %v463
    %510 = vmatprep.subr.mxu0 0.0
    %511 = vmatpush1.msra.mxu0 %v464
    %512 = vmatprep.subr.mxu0 0.0
    %513 = vmatpush1.msra.mxu0 %v465
    %514 = vmatprep.subr.mxu0 0.0
    %515 = vmatpush1.msra.mxu0 %v466
    %516 = vmatprep.subr.mxu0 0.0
    %517 = vmatpush1.msra.mxu0 %v467
    %518 = vmatprep.subr.mxu0 0.0
    %519 = vmatpush1.msra.mxu0 %v468
    %520 = vmatprep.subr.mxu0 0.0
    %521 = vmatpush1.msra.mxu0 %v469
    %522 = vmatprep.subr.mxu0 0.0
    %523 = vmatpush1.msra.mxu0 %v470
    %524 = vmatprep.subr.mxu0 0.0
    %525 = vmatpush1.msra.mxu0 %v471
    %526 = vmatprep.subr.mxu0 0.0
    %527 = vmatpush1.msra.mxu0 %v472
    %528 = vmatprep.subr.mxu0 0.0
    %529 = vmatpush1.msra.mxu0 %v473
    %530 = vmatprep.subr.mxu0 0.0
    %531 = vmatpush1.msra.mxu0 %v474
    %532 = vmatprep.subr.mxu0 0.0
    %533 = vmatpush1.msra.mxu0 %v475
    %534 = vmatprep.subr.mxu0 0.0
    %535 = vmatpush1.msra.mxu0 %v476
    %536 = vmatprep.subr.mxu0 0.0
    %537 = vmatpush1.msra.mxu0 %v477
    %538 = vmatprep.subr.mxu0 0.0
    %539 = vmatpush1.msra.mxu0 %v478
    %540 = vmatprep.subr.mxu0 0.0
    %541 = vmatpush1.msra.mxu0 %v479
    %542 = vmatprep.subr.mxu0 0.0
    %543 = vmatpush1.msra.mxu0 %v480
    %544 = vmatprep.subr.mxu0 0.0
    %545 = vmatpush1.msra.mxu0 %v481
    %546 = vmatprep.subr.mxu0 0.0
    %547 = vmatpush1.msra.mxu0 %v482
    %548 = vmatprep.subr.mxu0 0.0
    %549 = vmatpush1.msra.mxu0 %v483
    %550 = vmatprep.subr.mxu0 0.0
    %551 = vmatpush1.msra.mxu0 %v484
    %552 = vmatprep.subr.mxu0 0.0
    %553 = vmatpush1.msra.mxu0 %v485
    %554 = vmatprep.subr.mxu0 0.0
    %555 = vmatpush1.msra.mxu0 %v486
    %556 = vmatprep.subr.mxu0 0.0
    %557 = vmatpush1.msra.mxu0 %v487
    %558 = vmatprep.subr.mxu0 0.0
    %559 = vmatpush1.msra.mxu0 %v488
    %560 = vmatprep.mubr.f32.mxu0 %v456
    %561 = vmatmul.mubr.f32.gmra.mrb[0].mxu0 %v455
    %v562 = vpop.f32.mrb[0].mxu0
    %v563 = vadd.f32 %v494, %v562
    %v564 = vpop.f32.mrb[0].mxu0
    %565 = vdwg.mxu0
    %vm566 = vcmask 64512
    %567 = vst.msk [vmem:[#allocation7] sm:$0xff] %vm566, %v563
    // Predicated region
    $region46: #{tpu_custom_call.1} parent=1 // pred_check
      _
    $region47: #{tpu_custom_call.1} parent=1 // pred_check_branch
      %569 = sbr.rel (0) target = $region49
    $region48: #{tpu_custom_call.1} parent=1 // pred_region
      %s571 = ssub.s32 128, 128
      %572 = vsyncadd [#allocation4], %s571
      %s574 = sshll.u32 [#allocation7], 4
      %s575 = int_to_ptr.vmem [resolvable:$true] %s574
      %577 = dma.vmem_to_hbm [thread:$0]  %s575, 128, %s9, [#allocation4]
    $region49: #{tpu_custom_call.1} parent=1 // pred_fallthru
      _
    // Predicated region
    $region50: #{tpu_custom_call.1} parent=1 // pred_check
      _
    $region51: #{tpu_custom_call.1} parent=1 // pred_check_branch
      %579 = sbr.rel (0) target = $region53
    $region52: #{tpu_custom_call.1} parent=1 // pred_region
      %580 = dma.done [#allocation4], 128
    $region53: #{tpu_custom_call.1} parent=1 // pred_fallthru
      _
    %581 = vsyncpa [#allocation3], 1
    %582 = vsyncpa [#allocation6], 1
    %583 = vsyncpa [#allocation4], 1

</llo_original>
